<compile_context>
chip_gen: v7x
topology: tpu7x:2x2x1
jax: 0.10.0
libtpu: 0.0.40
codegen_flags: <defaults>
</compile_context>

<pallas_src>
from functools import partial

import jax
import jax.numpy as jnp
from jax.experimental import pallas as pl
from jax.experimental.pallas import tpu as pltpu


def affine_kernel(x_ref, g_ref, b_ref, o_ref):
    # x_ref/o_ref: (TM, D) tiles; g_ref/b_ref: (1, D) resident f32 rows.
    # Compute in f32 (sublane-broadcast of g/b), cast only the store.
    x = x_ref[...].astype(jnp.float32)
    o_ref[...] = (x * g_ref[...] + b_ref[...]).astype(o_ref.dtype)


def _round_up(v, m):
    return ((v + m - 1) // m) * m


@partial(jax.jit, static_argnames=("tm",))
def affine(x, g, b, tm=None):
    """x: (..., D); g, b: broadcastable to (1, 1, D) -> returns x * g + b."""
    orig_shape = x.shape
    D = orig_shape[-1]
    dtype = x.dtype
    itemsize = jnp.dtype(dtype).itemsize
    # Sublane multiple for the second-to-last block dim (8 f32 / 16 bf16 / 32 int8).
    sublane = {1: 32, 2: 16}.get(itemsize, 8)

    x2 = x.reshape(-1, D)
    rows = x2.shape[0]
    # Parameters stay f32 so the multiply-add matches PyTorch's f32 math.
    g2 = jnp.asarray(g, dtype=jnp.float32).reshape(1, D)
    b2 = jnp.asarray(b, dtype=jnp.float32).reshape(1, D)

    if tm is None:
        # ~4 MiB x-tile: near the HBM roofline while double-buffered in+out
        # (plus an f32 temp) stays well inside every generation's scoped VMEM.
        target_tile_bytes = 4 * 1024 * 1024
        tm = target_tile_bytes // max(1, D * itemsize)
        tm = max(sublane, min(8192, (tm // sublane) * sublane))
    else:
        tm = max(sublane, (tm // sublane) * sublane)
    rows_rounded = _round_up(rows, sublane)
    tm = min(tm, rows_rounded)

    n_tiles = pl.cdiv(rows, tm)
    # v7x megacore balance: avoid a single tile (one TC idle) or a small odd
    # tile count (one TC gets an extra tile) when there is enough work.
    if n_tiles == 1 and rows > sublane:
        half = _round_up((rows + 1) // 2, sublane)
        if sublane <= half < tm:
            tm = half
            n_tiles = pl.cdiv(rows, tm)
    elif 1 < n_tiles < 8 and n_tiles % 2 == 1:
        cand = max(sublane, _round_up(pl.cdiv(rows, n_tiles + 1), sublane))
        if pl.cdiv(rows, cand) % 2 == 0:
            tm = cand
            n_tiles = pl.cdiv(rows, cand)

    # VMEM budget: double-buffered x in + out tiles, one f32 temp tile,
    # resident g/b, margin.  Capped at 32 MiB (safe scoped limit on all gens).
    tile_bytes = tm * D * itemsize
    needed = 4 * tile_bytes + tm * D * 4 + 2 * D * 4 + (2 << 20)
    vmem_limit = int(min(max(needed, 16 * 1024 * 1024), 32 * 1024 * 1024))

    out = pl.pallas_call(
        affine_kernel,
        out_shape=jax.ShapeDtypeStruct((rows, D), dtype),
        grid_spec=pltpu.PrefetchScalarGridSpec(
            num_scalar_prefetch=0,
            grid=(n_tiles,),
            in_specs=[
                pl.BlockSpec((tm, D), lambda i: (i, 0)),   # x: one row-tile per step
                pl.BlockSpec((1, D), lambda i: (0, 0)),    # g: resident, reused
                pl.BlockSpec((1, D), lambda i: (0, 0)),    # b: resident, reused
            ],
            out_specs=pl.BlockSpec((tm, D), lambda i: (i, 0)),
        ),
        compiler_params=pltpu.CompilerParams(
            dimension_semantics=("parallel",),
            vmem_limit_bytes=vmem_limit,
        ),
    )(x2, g2, b2)

    return out.reshape(orig_shape)


if __name__ == "__main__":
    # Small shapes consistent with the module's (B, S, dim) convention.
    B, S, D = 2, 8, 128
    key = jax.random.PRNGKey(0)
    kx, kg, kb = jax.random.split(key, 3)

    x = jax.random.normal(kx, (B, S, D), dtype=jnp.float32)
    # nn.Parameter shapes from __init__: g = ones(1,1,dim), b = zeros(1,1,dim).
    # Perturb so the broadcasted multiply/add is actually exercised.
    g = jnp.ones((1, 1, D), dtype=jnp.float32) + 0.1 * jax.random.normal(kg, (1, 1, D), dtype=jnp.float32)
    b = jnp.zeros((1, 1, D), dtype=jnp.float32) + 0.1 * jax.random.normal(kb, (1, 1, D), dtype=jnp.float32)

    out = jax.block_until_ready(affine(x, g, b))
    ref = x * g + b  # plain-JAX reference of the PyTorch forward
    assert out.shape == (B, S, D) and out.dtype == x.dtype
    assert jnp.allclose(out, ref, atol=1e-6, rtol=1e-6)

    # Non-tile-aligned, multi-tile row count: exercises the ragged (masked)
    # final block path — no pad / slice around the kernel.
    B2, S2 = 3, 37
    x2 = jax.random.normal(kx, (B2, S2, D), dtype=jnp.float32)
    out2 = jax.block_until_ready(affine(x2, g, b, tm=32))
    assert jnp.allclose(out2, x2 * g + b, atol=1e-6, rtol=1e-6)

    # bf16 activations with f32 params: kernel computes in f32, casts the store.
    xb = jax.random.normal(kb, (B, S, D), dtype=jnp.bfloat16)
    outb = jax.block_until_ready(affine(xb, g, b))
    refb = (xb.astype(jnp.float32) * g + b).astype(jnp.bfloat16)
    assert outb.dtype == jnp.bfloat16
    assert jnp.allclose(outb.astype(jnp.float32), refb.astype(jnp.float32), atol=1e-2, rtol=1e-2)

    print("KERNEL_OK")
</pallas_src>

<mosaic_0001>
module attributes {stable_mosaic.version = 11 : i64} {
  func.func @affine_kernel(%arg0: i32, %arg1: memref<8x128xf32, #tpu.memory_space<vmem>>, %arg2: memref<1x128xf32, #tpu.memory_space<vmem>>, %arg3: memref<1x128xf32, #tpu.memory_space<vmem>>, %arg4: memref<8x128xf32, #tpu.memory_space<vmem>>) attributes {dimension_semantics = [#tpu.dimension_semantics<parallel>], iteration_bounds = array<i64: 2>, scalar_prefetch = 0 : i64, scratch_operands = 0 : i64, tpu.core_type = #tpu.core_type<tc>, window_params = [{transform_indices = @transform_0, window_bounds = array<i64: 8, 128>}, {pipeline_mode = #tpu.pipeline_mode<synchronous>, transform_indices = @transform_1, window_bounds = array<i64: 1, 128>}, {pipeline_mode = #tpu.pipeline_mode<synchronous>, transform_indices = @transform_2, window_bounds = array<i64: 1, 128>}, {transform_indices = @transform_3, window_bounds = array<i64: 8, 128>}]} {
    %c0 = arith.constant 0 : index
    %c0_0 = arith.constant 0 : index
    %0 = vector.load %arg1[%c0, %c0_0] : memref<8x128xf32, #tpu.memory_space<vmem>>, vector<8x128xf32>
    %c0_1 = arith.constant 0 : index
    %c0_2 = arith.constant 0 : index
    %1 = vector.load %arg2[%c0_1, %c0_2] : memref<1x128xf32, #tpu.memory_space<vmem>>, vector<1x128xf32>
    %2 = vector.broadcast %1 : vector<1x128xf32> to vector<8x128xf32>
    %3 = arith.mulf %0, %2 : vector<8x128xf32>
    %c0_3 = arith.constant 0 : index
    %c0_4 = arith.constant 0 : index
    %4 = vector.load %arg3[%c0_3, %c0_4] : memref<1x128xf32, #tpu.memory_space<vmem>>, vector<1x128xf32>
    %5 = vector.broadcast %4 : vector<1x128xf32> to vector<8x128xf32>
    %6 = arith.addf %3, %5 : vector<8x128xf32>
    %c0_5 = arith.constant 0 : index
    %c0_6 = arith.constant 0 : index
    %7 = vector.load %arg4[%c0_5, %c0_6] : memref<8x128xf32, #tpu.memory_space<vmem>>, vector<8x128xf32>
    tpu.vector_store %arg4[%c0_5, %c0_6], %6 {strides = array<i32>} : memref<8x128xf32, #tpu.memory_space<vmem>>, vector<8x128xf32>,
    return
  }
  func.func @transform_0(%arg0: i32) -> (i32, i32) {
    %c0_i32 = arith.constant 0 : i32
    %c0_i32_0 = arith.constant 0 : i32
    return %arg0, %c0_i32 : i32, i32
  }
  func.func @transform_1(%arg0: i32) -> (i32, i32) {
    %c0_i32 = arith.constant 0 : i32
    %c0_i32_0 = arith.constant 0 : i32
    %c0_i32_1 = arith.constant 0 : i32
    return %c0_i32, %c0_i32_0 : i32, i32
  }
  func.func @transform_2(%arg0: i32) -> (i32, i32) {
    %c0_i32 = arith.constant 0 : i32
    %c0_i32_0 = arith.constant 0 : i32
    %c0_i32_1 = arith.constant 0 : i32
    return %c0_i32, %c0_i32_0 : i32, i32
  }
  func.func @transform_3(%arg0: i32) -> (i32, i32) {
    %c0_i32 = arith.constant 0 : i32
    %c0_i32_0 = arith.constant 0 : i32
    return %arg0, %c0_i32 : i32, i32
  }
}

</mosaic_0001>

<llo_original>
// kernel: affine.1
$region0: #{affine.1}
  #allocation0 [shape = 'u32[]', space=smem, size = 0x4, offset = 0x4, fixed_abs, tag = 'smem constant byte address 0x4 - core index']
  #allocation1 [shape = 'u32[144,128]{1,0:T(1,128)}', space=vmem, size = 0x12000, scoped, tag = 'internal scratch']
  %s0 = inlined_call_operand.hbm [shape: f32[16,128], index: 0, kind: input, shape index: {}]
  %s1 = inlined_call_operand.vmem [shape: f32[1,128], index: 1, kind: input, shape index: {}]
  %s2 = inlined_call_operand.vmem [shape: f32[1,128], index: 2, kind: input, shape index: {}]
  %s3 = inlined_call_operand.hbm [shape: f32[16,128], index: 3, kind: output, shape index: {}]
  %s4 = sld [smem:[#allocation0]]
  $region49: #{affine.1} parent=0
    _
  %s6 = ssub.s32 1, %s4
  %s7 = scalar_select 0, %s6, %s4
  $region1: #{affine.1} parent=0
    #allocation2 [shape = 'u8[8192]{0}', space=vmem, size = 0x2000, scoped, tag = 'input window, operand 0']
    #allocation3 [shape = 's32[2]{0}', space=sflag, size = 0x8, scoped, tag = 'scoped memory for affine.1']
    #allocation4 [shape = 's32[2]{0}', space=sflag, size = 0x8, scoped, tag = 'scoped memory for affine.1']
    #allocation5 [shape = 'u8[8192]{0}', space=vmem, size = 0x2000, scoped, tag = 'output window, operand 0']
    %8 = vsyncpa [#allocation3], 0
    %s9 = scalar_lea.sflag [#allocation3], 1
    %10 = vsyncpa %s9, 0
    %11 = vsyncpa [#allocation4], 0
    %s12 = scalar_lea.sflag [#allocation4], 1
    %13 = vsyncpa %s12, 0
    loop: start=0, step=1, limit=4
    $region2: #{affine.1} parent=1 // loop_pre_header
      _
    $region3: #{affine.1} parent=1 // loop_header
      %s15 = sphi 0, %s19
      %p16 = scmp.ge.s32.totalorder %s15, 4
      %s25 = sphi 0, %s27
      %s28 = sphi 0, %s25
      %s29 = sphi 0, %s28
      %s45 = sphi 0, %s29
      %s49 = sphi 0, %s49
      %s51 = sphi 0, %s49
      %s52 = sphi 0, %s51
      %s66 = sphi 0, %s52
      %s70 = sphi 0, %s70
      %s72 = sphi 0, %s70
      %s73 = sphi 0, %s72
      %s87 = sphi 0, %s73
      %s93 = sphi 0, %s95
      %s96 = sphi 0, %s93
      %s97 = sphi 0, %s96
      %s113 = sphi 0, %s97
    $region4: #{affine.1} parent=1 // loop_header_branch
      %18 = sbr.rel (%p16) target = $region8
    $region5: #{affine.1} parent=1 // loop_body
      %s20 = ssub.s32 %s15, 1
      %s21 = ssub.s32 %s15, 2
      %s22 = sadd.s32 %s15, 1
      %s23 = ssub.s32 %s15, %s22
      %p24 = scmp.eq.s32.totalorder %s23, 0
      %s26 = sadd.s32 %s25, 1
      %s27 = scalar_select %p24, %s25, %s26
      %p30 = pneg %p24
      %p31 = scmp.eq.s32.totalorder %s15, 1
      %p32 = por %p30, %p31
      %p33 = scmp.ne.s32.totalorder %s25, %s28
      %p34 = scmp.eq.s32.totalorder %s15, 0
      %p35 = por %p33, %p34
      %p36 = scmp.ne.s32.totalorder %s25, %s28
      %p37 = scmp.eq.s32.totalorder %s20, 1
      %p38 = por %p36, %p37
      %p39 = scmp.ne.s32.totalorder %s28, %s29
      %p40 = scmp.eq.s32.totalorder %s20, 0
      %p41 = por %p39, %p40
      %p42 = scmp.ne.s32.totalorder %s28, %s29
      %p43 = scmp.eq.s32.totalorder %s21, 1
      %p44 = por %p42, %p43
      %p46 = scmp.ne.s32.totalorder %s29, %s45
      %p47 = scmp.eq.s32.totalorder %s21, 0
      %p48 = por %p46, %p47
      %s50 = sadd.s32 %s49, 1
      %p53 = scmp.eq.s32.totalorder %s15, 1
      %p54 = scmp.ne.s32.totalorder %s49, %s51
      %p55 = scmp.eq.s32.totalorder %s15, 0
      %p56 = por %p54, %p55
      %p57 = scmp.ne.s32.totalorder %s49, %s51
      %p58 = scmp.eq.s32.totalorder %s20, 1
      %p59 = por %p57, %p58
      %p60 = scmp.ne.s32.totalorder %s51, %s52
      %p61 = scmp.eq.s32.totalorder %s20, 0
      %p62 = por %p60, %p61
      %p63 = scmp.ne.s32.totalorder %s51, %s52
      %p64 = scmp.eq.s32.totalorder %s21, 1
      %p65 = por %p63, %p64
      %p67 = scmp.ne.s32.totalorder %s52, %s66
      %p68 = scmp.eq.s32.totalorder %s21, 0
      %p69 = por %p67, %p68
      %s71 = sadd.s32 %s70, 1
      %p74 = scmp.eq.s32.totalorder %s15, 1
      %p75 = scmp.ne.s32.totalorder %s70, %s72
      %p76 = scmp.eq.s32.totalorder %s15, 0
      %p77 = por %p75, %p76
      %p78 = scmp.ne.s32.totalorder %s70, %s72
      %p79 = scmp.eq.s32.totalorder %s20, 1
      %p80 = por %p78, %p79
      %p81 = scmp.ne.s32.totalorder %s72, %s73
      %p82 = scmp.eq.s32.totalorder %s20, 0
      %p83 = por %p81, %p82
      %p84 = scmp.ne.s32.totalorder %s72, %s73
      %p85 = scmp.eq.s32.totalorder %s21, 1
      %p86 = por %p84, %p85
      %p88 = scmp.ne.s32.totalorder %s73, %s87
      %p89 = scmp.eq.s32.totalorder %s21, 0
      %p90 = por %p88, %p89
      %s91 = ssub.s32 %s15, %s22
      %p92 = scmp.eq.s32.totalorder %s91, 0
      %s94 = sadd.s32 %s93, 1
      %s95 = scalar_select %p92, %s93, %s94
      %p98 = pneg %p92
      %p99 = scmp.eq.s32.totalorder %s15, 1
      %p100 = por %p98, %p99
      %p101 = scmp.ne.s32.totalorder %s93, %s96
      %p102 = scmp.eq.s32.totalorder %s15, 0
      %p103 = por %p101, %p102
      %p104 = scmp.ne.s32.totalorder %s93, %s96
      %p105 = scmp.eq.s32.totalorder %s20, 1
      %p106 = por %p104, %p105
      %p107 = scmp.ne.s32.totalorder %s96, %s97
      %p108 = scmp.eq.s32.totalorder %s20, 0
      %p109 = por %p107, %p108
      %p110 = scmp.ne.s32.totalorder %s96, %s97
      %p111 = scmp.eq.s32.totalorder %s21, 1
      %p112 = por %p110, %p111
      %p114 = scmp.ne.s32.totalorder %s97, %s113
      %p115 = scmp.eq.s32.totalorder %s21, 0
      %p116 = por %p114, %p115
      %p117 = scmp.le.s32.totalorder 1, %s15
      %p118 = scmp.lt.s32.totalorder %s15, 3
      %p119 = pnand %p117, %p118
      %p120 = pneg %p119
      // Predicated region
      $region9: #{affine.1} parent=5 // pred_check
        _
      $region10: #{affine.1} parent=5 // pred_check_branch
        %122 = sbr.rel (%p119) target = $region12
      $region11: #{affine.1} parent=5 // pred_region
        %s123 = ssub.s32 %s15, 1
        // Predicated region
        $region13: #{affine.1} parent=11 // pred_check
          %p124 = pneg %p62
        $region14: #{affine.1} parent=11 // pred_check_branch
          %126 = sbr.rel (%p124) target = $region16
        $region15: #{affine.1} parent=11 // pred_region
          _
        $region16: #{affine.1} parent=11 // pred_fallthru
          _
        // Predicated region
        $region17: #{affine.1} parent=11 // pred_check
          %p127 = pneg %p83
        $region18: #{affine.1} parent=11 // pred_check_branch
          %129 = sbr.rel (%p127) target = $region20
        $region19: #{affine.1} parent=11 // pred_region
          _
        $region20: #{affine.1} parent=11 // pred_fallthru
          _
      $region12: #{affine.1} parent=5 // pred_fallthru
        _
      %p130 = scmp.lt.s32.totalorder %s15, 2
      // Predicated region
      $region21: #{affine.1} parent=5 // pred_check
        %p131 = pneg %p130
      $region22: #{affine.1} parent=5 // pred_check_branch
        %133 = sbr.rel (%p131) target = $region24
      $region23: #{affine.1} parent=5 // pred_region
        // Predicated region
        $region25: #{affine.1} parent=23 // pred_check
          %p134 = pneg %p35
        $region26: #{affine.1} parent=23 // pred_check_branch
          %136 = sbr.rel (%p134) target = $region28
        $region27: #{affine.1} parent=23 // pred_region
          %s137 = sand.u32 %s25, 1
          %s138 = scalar_lea.sflag [#allocation3], %s137
          %s139 = sand.u32 %s25, 1
          %s140 = smul.addr %s139, 8
          %s141 = scalar_lea.vmem [#allocation2], %s140
          %s143 = ssub.s32 128, 128
          %144 = vsyncadd %s138, %s143
          %s145 = smul.addr %s15, 128
          %s146 = scalar_lea.hbm %s0, %s145
          %s148 = sshll.u32 %s141, 4
          %s149 = int_to_ptr.vmem [resolvable:$true] %s148
          %151 = dma.hbm_to_vmem [thread:$0]  %s146, 128, %s149, %s138
        $region28: #{affine.1} parent=23 // pred_fallthru
          _
      $region24: #{affine.1} parent=5 // pred_fallthru
        _
      %p152 = scmp.le.s32.totalorder 1, %s15
      %p153 = scmp.lt.s32.totalorder %s15, 3
      %p154 = pnand %p152, %p153
      %p155 = pneg %p154
      // Predicated region
      $region29: #{affine.1} parent=5 // pred_check
        _
      $region30: #{affine.1} parent=5 // pred_check_branch
        %157 = sbr.rel (%p154) target = $region32
      $region31: #{affine.1} parent=5 // pred_region
        %s158 = ssub.s32 %s15, 1
        %s159 = sand.u32 %s28, 1
        %s160 = scalar_lea.sflag [#allocation3], %s159
        %s161 = sand.u32 %s28, 1
        %s162 = smul.addr %s161, 8
        %s163 = scalar_lea.vmem [#allocation2], %s162
        // Predicated region
        $region33: #{affine.1} parent=31 // pred_check
          %p164 = pneg %p41
        $region34: #{affine.1} parent=31 // pred_check_branch
          %166 = sbr.rel (%p164) target = $region36
        $region35: #{affine.1} parent=31 // pred_region
          %167 = dma.done %s160, 128
        $region36: #{affine.1} parent=31 // pred_fallthru
          _
        %s168 = sand.u32 %s28, 1
        %s169 = scalar_lea.sflag [#allocation3], %s168
        %s170 = sand.u32 %s28, 1
        %s171 = smul.addr %s170, 8
        %s172 = scalar_lea.vmem [#allocation2], %s171
        %p173 = pneg %p41
        %p174 = pneg %p38
        %p175 = pneg %p62
        %p176 = pneg %p59
        %p177 = pneg %p83
        %p178 = pneg %p80
        %p179 = pneg %p109
        %p180 = pneg %p106
        %s181 = sand.u32 %s96, 1
        %s182 = scalar_lea.sflag [#allocation4], %s181
        %s183 = sand.u32 %s96, 1
        %s184 = smul.addr %s183, 8
        %s185 = scalar_lea.vmem [#allocation5], %s184
        %v186 = vld [vmem:[%s163] sm:$0xff]
        %v187 = vld [vmem:[%s1] sm:$0x1]
        %v189 = vlaneseq
        %v190 = vshrl.u32 %v189, 7
        %v191 = vsub.s32 0, %v190
        %v192 = vrot.slane %v187, %v191
        %v194 = vmul.f32 %v186, %v192
        %v195 = vld [vmem:[%s2] sm:$0x1]
        %v197 = vlaneseq
        %v198 = vshrl.u32 %v197, 7
        %v199 = vsub.s32 0, %v198
        %v200 = vrot.slane %v195, %v199
        %v202 = vadd.f32 %v194, %v200
        %203 = vst [vmem:[%s185] sm:$0xff] %v202
        %s204 = sand.u32 %s96, 1
        %s205 = scalar_lea.sflag [#allocation4], %s204
        %s206 = sand.u32 %s96, 1
        %s207 = smul.addr %s206, 8
        %s208 = scalar_lea.vmem [#allocation5], %s207
        // Predicated region
        $region37: #{affine.1} parent=31 // pred_check
          %p209 = pneg %p106
        $region38: #{affine.1} parent=31 // pred_check_branch
          %211 = sbr.rel (%p209) target = $region40
        $region39: #{affine.1} parent=31 // pred_region
          %s213 = ssub.s32 128, 128
          %214 = vsyncadd %s205, %s213
          %s215 = smul.addr %s20, 128
          %s216 = scalar_lea.hbm %s3, %s215
          %s218 = sshll.u32 %s208, 4
          %s219 = int_to_ptr.vmem [resolvable:$true] %s218
          %221 = dma.vmem_to_hbm [thread:$0]  %s219, 128, %s216, %s205
        $region40: #{affine.1} parent=31 // pred_fallthru
          _
      $region32: #{affine.1} parent=5 // pred_fallthru
        _
      %p222 = scmp.le.s32.totalorder 2, %s15
      // Predicated region
      $region41: #{affine.1} parent=5 // pred_check
        %p223 = pneg %p222
      $region42: #{affine.1} parent=5 // pred_check_branch
        %225 = sbr.rel (%p223) target = $region44
      $region43: #{affine.1} parent=5 // pred_region
        %s226 = ssub.s32 %s15, 2
        // Predicated region
        $region45: #{affine.1} parent=43 // pred_check
          %p227 = pneg %p112
        $region46: #{affine.1} parent=43 // pred_check_branch
          %229 = sbr.rel (%p227) target = $region48
        $region47: #{affine.1} parent=43 // pred_region
          %s230 = sand.u32 %s97, 1
          %s231 = scalar_lea.sflag [#allocation4], %s230
          %s232 = sand.u32 %s97, 1
          %s233 = smul.addr %s232, 8
          %s234 = scalar_lea.vmem [#allocation5], %s233
          %235 = dma.done %s231, 128
        $region48: #{affine.1} parent=43 // pred_fallthru
          _
      $region44: #{affine.1} parent=5 // pred_fallthru
        _
    $region6: #{affine.1} parent=1 // loop_footer
      %s19 = sadd.s32 1, %s15
    $region7: #{affine.1} parent=1 // loop_footer_branch
      %14 = sbr.rel target = $region3
    $region8: #{affine.1} parent=1 // loop_exit
      _
    %236 = vsyncpa [#allocation3], 1
    %s237 = scalar_lea.sflag [#allocation3], 1
    %238 = vsyncpa %s237, 1
    %239 = vsyncpa [#allocation4], 1
    %s240 = scalar_lea.sflag [#allocation4], 1
    %241 = vsyncpa %s240, 1

</llo_original>
